<compile_context>
chip_gen: v6e
topology: v6e:2x2x1
jax: 0.10.0
libtpu: 0.0.40
codegen_flags: <defaults>
</compile_context>

<pallas_src>
import jax
import jax.numpy as jnp
from jax.experimental import pallas as pl
from jax.experimental.pallas import tpu as pltpu


def _copy_kernel(x_ref, o_ref):
    # Straight pass-through of the current (lane-dense) tile.
    o_ref[...] = x_ref[...]


_TARGET_BLOCK_BYTES = 2 * 1024 * 1024  # ~2 MiB per block; 2 in-bufs + 2 out-bufs
                                       # => ~8 MiB VMEM, safe on all generations.


def _pick_lane_width(n_elems: int) -> int:
    """Largest lane width (multiple of 128) that evenly divides the element count."""
    for lanes in (4096, 2048, 1024, 512, 256, 128):
        if n_elems % lanes == 0:
            return lanes
    return 0  # not lane-alignable without padding


def _pick_row_tile(rows: int, lanes: int, itemsize: int) -> int:
    """Largest row tile (multiple of 8, dividing `rows`) that keeps the block ~2 MiB."""
    max_rows = max(8, _TARGET_BLOCK_BYTES // (lanes * itemsize))
    if rows <= max_rows:
        return rows  # full-extent block along rows (always legal)
    t = (max_rows // 8) * 8
    while t >= 8:
        if rows % t == 0:
            return t  # sublane-aligned divisor -> exact grid, no masking needed
        t -= 8
    return rows  # fallback: single big block


def _materialized_identity_copy(x: jnp.ndarray) -> jnp.ndarray:
    """Explicit HBM->HBM copy of `x` via a lane-dense tiled Pallas kernel."""
    orig_shape = x.shape
    n = x.size
    lanes = _pick_lane_width(n)
    if n == 0 or lanes == 0:
        # TODO(synk): element counts not divisible by 128 fall back to the
        # zero-copy identity (bit-identical semantics, no kernel launched).
        return x

    rows = n // lanes
    x2d = x.reshape(rows, lanes)  # metadata-only reshape -> lane-dense slab
    row_tile = _pick_row_tile(rows, lanes, x.dtype.itemsize)
    grid = (rows // row_tile,)

    out2d = pl.pallas_call(
        _copy_kernel,
        out_shape=jax.ShapeDtypeStruct((rows, lanes), x.dtype),
        grid_spec=pltpu.PrefetchScalarGridSpec(
            num_scalar_prefetch=0,
            grid=grid,
            in_specs=[pl.BlockSpec((row_tile, lanes), lambda i: (i, 0))],
            out_specs=pl.BlockSpec((row_tile, lanes), lambda i: (i, 0)),
        ),
        compiler_params=pltpu.CompilerParams(
            dimension_semantics=("parallel",),  # lets v7x shard blocks across its 2 TCs
        ),
    )(x2d)

    return out2d.reshape(orig_shape)


def identity_feature_projector(x: jnp.ndarray, *, materialize: bool = False) -> jnp.ndarray:
    """Pallas implementation of IdentityFeatureProjector.forward.

    Default (hot path): returns `x` unchanged — zero HBM traffic, exactly the
    PyTorch module's semantics.  With materialize=True an explicit copy is
    produced via an HBM-roofline-bound Pallas copy kernel.
    """
    if not materialize:
        return x
    return _materialized_identity_copy(x)


if __name__ == "__main__":
    # IdentityFeatureProjector(input_size=32, output_size=32) — no parameters.
    key = jax.random.PRNGKey(0)

    # Small shape implied by the module: (batch, seq, hidden).
    batch, seq, hidden = 2, 8, 32
    x = jax.random.normal(key, (batch, seq, hidden), dtype=jnp.float32)

    # Hot path: no kernel, no copy.
    y_fast = identity_feature_projector(x)
    y_fast = jax.block_until_ready(y_fast)
    assert y_fast.shape == x.shape and y_fast.dtype == x.dtype
    assert bool(jnp.all(y_fast == x))

    # Explicitly materialized path: exercises the Pallas copy kernel
    # (single lane-dense (1, 512) block for this small input).
    y_copy = identity_feature_projector(x, materialize=True)
    y_copy = jax.block_until_ready(y_copy)
    assert y_copy.shape == x.shape and y_copy.dtype == x.dtype
    assert bool(jnp.all(y_copy == x))

    # Second check exercising multi-block tiling (rows=256, lanes=4096,
    # row_tile=128 -> grid=(2,), so v7x can split across both TensorCores).
    x_big = jax.random.normal(jax.random.PRNGKey(1), (8, 256, 512), dtype=jnp.float32)
    y_big = identity_feature_projector(x_big, materialize=True)
    y_big = jax.block_until_ready(y_big)
    assert y_big.shape == x_big.shape and y_big.dtype == x_big.dtype
    assert bool(jnp.all(y_big == x_big))

    print("KERNEL_OK")
</pallas_src>

<mosaic_0001>
module attributes {stable_mosaic.version = 11 : i64} {
  func.func @_copy_kernel(%arg0: i32, %arg1: memref<1x512xf32, #tpu.memory_space<vmem>>, %arg2: memref<1x512xf32, #tpu.memory_space<vmem>>) attributes {dimension_semantics = [#tpu.dimension_semantics<parallel>], iteration_bounds = array<i64: 1>, scalar_prefetch = 0 : i64, scratch_operands = 0 : i64, tpu.core_type = #tpu.core_type<tc>, window_params = [{transform_indices = @transform_0, window_bounds = array<i64: 1, 512>}, {transform_indices = @transform_1, window_bounds = array<i64: 1, 512>}]} {
    %c0 = arith.constant 0 : index
    %c0_0 = arith.constant 0 : index
    %0 = vector.load %arg1[%c0, %c0_0] : memref<1x512xf32, #tpu.memory_space<vmem>>, vector<1x512xf32>
    %c0_1 = arith.constant 0 : index
    %c0_2 = arith.constant 0 : index
    %1 = vector.load %arg2[%c0_1, %c0_2] : memref<1x512xf32, #tpu.memory_space<vmem>>, vector<1x512xf32>
    tpu.vector_store %arg2[%c0_1, %c0_2], %0 {strides = array<i32>} : memref<1x512xf32, #tpu.memory_space<vmem>>, vector<1x512xf32>,
    return
  }
  func.func @transform_0(%arg0: i32) -> (i32, i32) {
    %c0_i32 = arith.constant 0 : i32
    %c0_i32_0 = arith.constant 0 : i32
    return %arg0, %c0_i32 : i32, i32
  }
  func.func @transform_1(%arg0: i32) -> (i32, i32) {
    %c0_i32 = arith.constant 0 : i32
    %c0_i32_0 = arith.constant 0 : i32
    return %arg0, %c0_i32 : i32, i32
  }
}

</mosaic_0001>

<llo_original>
// kernel: tpu_custom_call.1
$region0: #{tpu_custom_call.1}
  #allocation0 [shape = 'u32[]', space=smem, size = 0x4, offset = 0x4, fixed_abs, tag = 'smem constant byte address 0x4 - core index']
  #allocation1 [shape = 'u32[144,128]{1,0:T(1,128)}', space=vmem, size = 0x12000, scoped, tag = 'internal scratch']
  %s0 = inlined_call_operand.hbm [shape: f32[1,512], index: 0, kind: input, shape index: {}]
  %s1 = inlined_call_operand.hbm [shape: f32[1,512], index: 1, kind: output, shape index: {}]
  %s2 = sld [smem:[#allocation0]]
  $region18: #{tpu_custom_call.1} parent=0
    _
  %s4 = ssub.s32 1, %s2
  %s5 = scalar_select 0, %s4, %s2
  $region1: #{tpu_custom_call.1} parent=0
    #allocation2 [shape = 'u8[2048]{0}', space=vmem, size = 0x800, scoped, tag = 'input window, operand 0, single buffered']
    #allocation3 [shape = 's32[1]{0}', space=sflag, size = 0x4, scoped, tag = 'scoped memory for tpu_custom_call.1']
    #allocation4 [shape = 's32[1]{0}', space=sflag, size = 0x4, scoped, tag = 'scoped memory for tpu_custom_call.1']
    #allocation5 [shape = 'u8[2048]{0}', space=vmem, size = 0x800, scoped, tag = 'output window, operand 0, single buffered']
    %6 = vsyncpa [#allocation3], 0
    %7 = vsyncpa [#allocation4], 0
    // Predicated region
    $region2: #{tpu_custom_call.1} parent=1 // pred_check
      _
    $region3: #{tpu_custom_call.1} parent=1 // pred_check_branch
      %9 = sbr.rel (0) target = $region5
    $region4: #{tpu_custom_call.1} parent=1 // pred_region
      %s11 = ssub.s32 64, 64
      %12 = vsyncadd [#allocation3], %s11
      %s14 = sshll.u32 [#allocation2], 4
      %s15 = int_to_ptr.vmem [resolvable:$true] %s14
      %17 = dma.hbm_to_vmem [thread:$0]  %s0, 64, %s15, [#allocation3]
    $region5: #{tpu_custom_call.1} parent=1 // pred_fallthru
      _
    // Predicated region
    $region6: #{tpu_custom_call.1} parent=1 // pred_check
      _
    $region7: #{tpu_custom_call.1} parent=1 // pred_check_branch
      %19 = sbr.rel (0) target = $region9
    $region8: #{tpu_custom_call.1} parent=1 // pred_region
      %20 = dma.done [#allocation3], 64
    $region9: #{tpu_custom_call.1} parent=1 // pred_fallthru
      _
    %v21 = vld [vmem:[#allocation2] sm:$0xf]
    %v22 = vlaneseq
    %vm23 = vcmp.ge.s32.totalorder %v22, 0
    %vm24 = vcmp.lt.s32.totalorder %v22, 512
    %vm25 = vmand %vm23, %vm24
    %26 = vst.msk [vmem:[#allocation5] sm:$0xf] %vm25, %v21
    // Predicated region
    $region10: #{tpu_custom_call.1} parent=1 // pred_check
      _
    $region11: #{tpu_custom_call.1} parent=1 // pred_check_branch
      %28 = sbr.rel (0) target = $region13
    $region12: #{tpu_custom_call.1} parent=1 // pred_region
      %s30 = ssub.s32 64, 64
      %31 = vsyncadd [#allocation4], %s30
      %s33 = sshll.u32 [#allocation5], 4
      %s34 = int_to_ptr.vmem [resolvable:$true] %s33
      %36 = dma.vmem_to_hbm [thread:$0]  %s34, 64, %s1, [#allocation4]
    $region13: #{tpu_custom_call.1} parent=1 // pred_fallthru
      _
    // Predicated region
    $region14: #{tpu_custom_call.1} parent=1 // pred_check
      _
    $region15: #{tpu_custom_call.1} parent=1 // pred_check_branch
      %38 = sbr.rel (0) target = $region17
    $region16: #{tpu_custom_call.1} parent=1 // pred_region
      %39 = dma.done [#allocation4], 64
    $region17: #{tpu_custom_call.1} parent=1 // pred_fallthru
      _
    %40 = vsyncpa [#allocation3], 1
    %41 = vsyncpa [#allocation4], 1

</llo_original>
